<compile_context>
chip_gen: v7x
topology: tpu7x:2x2x1
jax: 0.10.0
libtpu: 0.0.40
codegen_flags: <defaults>
</compile_context>

<pallas_src>
import functools

import jax
import jax.numpy as jnp
from jax import lax
from jax.experimental import pallas as pl
from jax.experimental.pallas import tpu as pltpu

_MiB = 1024 * 1024


# ----------------------------------------------------------------------------
# Kernels
# ----------------------------------------------------------------------------
def _row_stats_kernel(x_ref, sum_ref, sq_ref):
    """Per-row sum and sum-of-squares, accumulated over the lane (spatial) grid
    axis.  The output blocks keep the same block index across that axis, so
    they stay VMEM-resident and act as accumulators (P3 pattern)."""
    l = pl.program_id(1)

    @pl.when(l == 0)
    def _():
        sum_ref[...] = jnp.zeros_like(sum_ref)
        sq_ref[...] = jnp.zeros_like(sq_ref)

    x = x_ref[...].astype(jnp.float32)                     # (TR, TL)
    sum_ref[...] += jnp.sum(x, axis=1, keepdims=True)      # (TR, 1)
    sq_ref[...] += jnp.sum(x * x, axis=1, keepdims=True)   # (TR, 1)


def _bn_apply_kernel(x_ref, scale_ref, shift_ref, o_ref, *, negative_slope):
    """Fused y = x * scale + shift followed by LeakyReLU(negative_slope)."""
    x = x_ref[...].astype(jnp.float32)                     # (TR, TL)
    y = x * scale_ref[...] + shift_ref[...]                # (TR, 1) broadcast over lanes
    o_ref[...] = jnp.where(y > 0, y, negative_slope * y).astype(o_ref.dtype)


def _bn_fused_resident_kernel(x_ref, gamma_ref, beta_ref, o_ref, *,
                              count, eps, negative_slope):
    """Single-pass variant for activations fully resident in VMEM: x is read
    from HBM exactly once (stats + normalize + affine + LeakyReLU fused)."""
    x = x_ref[...].astype(jnp.float32)                     # (N, C, L)
    s = jnp.sum(x, axis=2, keepdims=True)
    s = jnp.sum(s, axis=0, keepdims=True)                  # (1, C, 1)
    sq = jnp.sum(x * x, axis=2, keepdims=True)
    sq = jnp.sum(sq, axis=0, keepdims=True)                # (1, C, 1)
    inv_count = 1.0 / count
    mean = s * inv_count
    # Biased variance (what PyTorch uses for the normalization itself), clamped
    # against f32 cancellation before rsqrt.
    var = jnp.maximum(sq * inv_count - mean * mean, 0.0)
    inv_std = lax.rsqrt(var + eps)
    scale = gamma_ref[...] * inv_std                       # (1, C, 1)
    shift = beta_ref[...] - mean * scale
    y = x * scale + shift
    o_ref[...] = jnp.where(y > 0, y, negative_slope * y).astype(o_ref.dtype)


# ----------------------------------------------------------------------------
# Tiling / VMEM policy
# ----------------------------------------------------------------------------
def _vmem_policy():
    """(vmem_limit_bytes, per-block byte budget) derived from physical VMEM."""
    try:
        cap = int(pltpu.get_tpu_info().vmem_capacity_bytes)
    except Exception:
        cap = 64 * _MiB                       # conservative (v7x per-TC VMEM)
    # 96 MiB on v5e/v6e (128 MiB physical), 48 MiB on v7x (64 MiB physical).
    vmem_limit = min(int(cap * 0.75), 100 * _MiB)
    # Apply pass keeps ~2 input + 2 output buffers live (double buffering) plus
    # small vectors / semaphores -> budget each (TR, TL) block at ~1/6 of limit.
    block_budget = vmem_limit // 6
    return vmem_limit, block_budget


def _divisor_tiles(total, unit):
    """Divisors of `total` that are multiples of `unit`, descending.  If `total`
    is not a multiple of `unit`, the only legal tile is the full extent."""
    if total % unit != 0:
        return [total]
    q = total // unit
    return [d * unit for d in range(q, 0, -1) if q % d == 0]


def _pick_tiles(R, L, itemsize, block_budget):
    """Largest (TR, TL) with TR | R (multiple of 8 when possible), TL | L
    (multiple of 128 when possible, lane-dense) and TR*TL*itemsize within the
    per-block budget whenever the divisor structure allows it."""
    lane_opts = _divisor_tiles(L, 128)        # descending
    row_opts = _divisor_tiles(R, 8)           # descending
    min_row = row_opts[-1]

    tl = lane_opts[-1]
    for cand in lane_opts:                    # prefer the largest lane-dense tile
        if cand * min_row * itemsize <= block_budget:
            tl = cand
            break
    tr = row_opts[-1]
    for cand in row_opts:
        if cand * tl * itemsize <= block_budget:
            tr = cand
            break
    return tr, tl


# ----------------------------------------------------------------------------
# Wrapper
# ----------------------------------------------------------------------------
def batchnorm_leakyrelu(x_nchw, gamma, beta, *, eps=1e-5, negative_slope=0.1,
                        single_pass=None):
    """BatchNorm2d (training-mode batch statistics) + LeakyReLU on NCHW input."""
    N, C, H, W = x_nchw.shape
    L = H * W
    R = N * C
    itemsize = jnp.dtype(x_nchw.dtype).itemsize
    count = float(N * L)                      # elements per channel
    g32 = gamma.astype(jnp.float32)
    b32 = beta.astype(jnp.float32)

    vmem_limit, block_budget = _vmem_policy()

    if single_pass is None:
        # 2x in-buffers + 2x out-buffers + ~3 f32 temporaries, with headroom.
        resident_bytes = R * L * (4 * itemsize + 3 * 4)
        single_pass = resident_bytes <= int(vmem_limit * 0.7)

    if single_pass:
        # Whole activation resident in VMEM -> x read from HBM exactly once.
        x3 = x_nchw.reshape(N, C, L)          # free view of contiguous NCHW
        full_spec = pl.BlockSpec((N, C, L), lambda i: (0, 0, 0))
        vec_spec = pl.BlockSpec((1, C, 1), lambda i: (0, 0, 0))
        y3 = pl.pallas_call(
            functools.partial(_bn_fused_resident_kernel, count=count, eps=eps,
                              negative_slope=negative_slope),
            out_shape=jax.ShapeDtypeStruct((N, C, L), x_nchw.dtype),
            grid_spec=pltpu.PrefetchScalarGridSpec(
                num_scalar_prefetch=0,
                grid=(1,),
                in_specs=[full_spec, vec_spec, vec_spec],
                out_specs=full_spec,
            ),
            compiler_params=pltpu.CompilerParams(
                dimension_semantics=("arbitrary",),
                vmem_limit_bytes=vmem_limit),
            cost_estimate=pl.CostEstimate(
                flops=int(7 * R * L), transcendentals=int(C),
                bytes_accessed=int(2 * R * L * itemsize)),
        )(x3, g32.reshape(1, C, 1), b32.reshape(1, C, 1))
        return y3.reshape(N, C, H, W)

    # ------------------------- two-pass path --------------------------------
    x2 = x_nchw.reshape(R, L)                 # free view of contiguous NCHW
    TR, TL = _pick_tiles(R, L, itemsize, block_budget)
    grid = (R // TR, L // TL)

    x_spec = pl.BlockSpec((TR, TL), lambda i, l: (i, l))
    vec_spec = pl.BlockSpec((TR, 1), lambda i, l: (i, 0))

    # Pass 1: per-row partial sums.  Row axis "parallel" -> on v7x both
    # TensorCores share the x re-read; spatial (reduction) axis last, arbitrary.
    row_sum, row_sq = pl.pallas_call(
        _row_stats_kernel,
        out_shape=(jax.ShapeDtypeStruct((R, 1), jnp.float32),
                   jax.ShapeDtypeStruct((R, 1), jnp.float32)),
        grid_spec=pltpu.PrefetchScalarGridSpec(
            num_scalar_prefetch=0,
            grid=grid,
            in_specs=[x_spec],
            out_specs=[vec_spec, vec_spec],
        ),
        compiler_params=pltpu.CompilerParams(
            dimension_semantics=("parallel", "arbitrary"),
            vmem_limit_bytes=vmem_limit),
        cost_estimate=pl.CostEstimate(
            flops=int(3 * R * L), transcendentals=0,
            bytes_accessed=int(R * L * itemsize + 8 * R)),
    )(x2)

    # Tiny per-channel finalize (O(N*C) scalars) in the wrapper.
    ch_sum = jnp.sum(row_sum.reshape(N, C), axis=0)
    ch_sq = jnp.sum(row_sq.reshape(N, C), axis=0)
    mean = ch_sum / count
    var = jnp.maximum(ch_sq / count - mean * mean, 0.0)   # clamp f32 cancellation
    inv_std = lax.rsqrt(var + eps)
    scale = g32 * inv_std                                  # gamma / sqrt(var+eps)
    shift = b32 - mean * scale
    scale_r = jnp.broadcast_to(scale[None, :], (N, C)).reshape(R, 1)
    shift_r = jnp.broadcast_to(shift[None, :], (N, C)).reshape(R, 1)

    # Pass 2: normalize + affine + LeakyReLU with lane-dense output tiles.
    y2 = pl.pallas_call(
        functools.partial(_bn_apply_kernel, negative_slope=negative_slope),
        out_shape=jax.ShapeDtypeStruct((R, L), x_nchw.dtype),
        grid_spec=pltpu.PrefetchScalarGridSpec(
            num_scalar_prefetch=0,
            grid=grid,
            in_specs=[x_spec, vec_spec, vec_spec],
            out_specs=x_spec,
        ),
        compiler_params=pltpu.CompilerParams(
            dimension_semantics=("parallel", "parallel"),
            vmem_limit_bytes=vmem_limit),
        cost_estimate=pl.CostEstimate(
            flops=int(4 * R * L), transcendentals=0,
            bytes_accessed=int(2 * R * L * itemsize + 8 * R)),
    )(x2, scale_r, shift_r)

    return y2.reshape(N, C, H, W)


# TODO(synk): running_mean / running_var tracking (eval-mode statistics and the
# momentum update of nn.BatchNorm2d) is not implemented; this matches a freshly
# constructed module evaluated in training mode (batch statistics).


# ----------------------------------------------------------------------------
if __name__ == "__main__":
    key = jax.random.PRNGKey(0)
    k_x, k_g, k_b = jax.random.split(key, 3)

    N, C, H, W = 2, 4, 16, 16
    x = jax.random.normal(k_x, (N, C, H, W), dtype=jnp.float32)
    gamma = jax.random.uniform(k_g, (C,), jnp.float32, 0.5, 1.5)   # bn.weight
    beta = jax.random.normal(k_b, (C,), jnp.float32) * 0.1         # bn.bias

    # Pure-JAX reference (training-mode batch stats, biased variance).
    mean = jnp.mean(x, axis=(0, 2, 3), keepdims=True)
    var = jnp.mean((x - mean) ** 2, axis=(0, 2, 3), keepdims=True)
    ref = (x - mean) / jnp.sqrt(var + 1e-5)
    ref = ref * gamma.reshape(1, C, 1, 1) + beta.reshape(1, C, 1, 1)
    ref = jnp.where(ref > 0, ref, 0.1 * ref)

    # Auto dispatch: this small activation takes the single-pass fused kernel.
    fwd_auto = jax.jit(batchnorm_leakyrelu)
    y_auto = fwd_auto(x, gamma, beta)
    jax.block_until_ready(y_auto)
    assert y_auto.shape == (N, C, H, W)
    err_auto = float(jnp.max(jnp.abs(y_auto - ref)))
    assert err_auto < 1e-3, err_auto

    # Explicitly exercise the two-pass (large-activation) code path as well.
    fwd_two = jax.jit(functools.partial(batchnorm_leakyrelu, single_pass=False))
    y_two = fwd_two(x, gamma, beta)
    jax.block_until_ready(y_two)
    err_two = float(jnp.max(jnp.abs(y_two - ref)))
    assert err_two < 1e-3, err_two

    print("KERNEL_OK")
</pallas_src>

<mosaic_0001>
module attributes {stable_mosaic.version = 11 : i64} {
  func.func @_bn_fused_resident_kernel(%arg0: i32, %arg1: memref<2x4x256xf32, #tpu.memory_space<vmem>>, %arg2: memref<1x4x1xf32, #tpu.memory_space<vmem>>, %arg3: memref<1x4x1xf32, #tpu.memory_space<vmem>>, %arg4: memref<2x4x256xf32, #tpu.memory_space<vmem>>) attributes {dimension_semantics = [#tpu.dimension_semantics<arbitrary>], iteration_bounds = array<i64: 1>, scalar_prefetch = 0 : i64, scratch_operands = 0 : i64, tpu.core_type = #tpu.core_type<tc>, window_params = [{pipeline_mode = #tpu.pipeline_mode<synchronous>, transform_indices = @transform_0, window_bounds = array<i64: 2, 4, 256>}, {pipeline_mode = #tpu.pipeline_mode<synchronous>, transform_indices = @transform_1, window_bounds = array<i64: 1, 4, 1>}, {pipeline_mode = #tpu.pipeline_mode<synchronous>, transform_indices = @transform_2, window_bounds = array<i64: 1, 4, 1>}, {pipeline_mode = #tpu.pipeline_mode<synchronous>, transform_indices = @transform_3, window_bounds = array<i64: 2, 4, 256>}]} {
    %c0 = arith.constant 0 : index
    %c0_0 = arith.constant 0 : index
    %c0_1 = arith.constant 0 : index
    %0 = vector.load %arg1[%c0, %c0_0, %c0_1] : memref<2x4x256xf32, #tpu.memory_space<vmem>>, vector<2x4x256xf32>
    %cst = arith.constant dense<0.000000e+00> : vector<2x4xf32>
    %1 = vector.multi_reduction <add>, %0, %cst [2] : vector<2x4x256xf32> to vector<2x4xf32>
    %2 = vector.shape_cast %1 : vector<2x4xf32> to vector<2x4x1xf32>
    %cst_2 = arith.constant dense<0.000000e+00> : vector<4x1xf32>
    %3 = vector.multi_reduction <add>, %2, %cst_2 [0] : vector<2x4x1xf32> to vector<4x1xf32>
    %4 = vector.shape_cast %3 : vector<4x1xf32> to vector<1x4x1xf32>
    %5 = arith.mulf %0, %0 : vector<2x4x256xf32>
    %cst_3 = arith.constant dense<0.000000e+00> : vector<2x4xf32>
    %6 = vector.multi_reduction <add>, %5, %cst_3 [2] : vector<2x4x256xf32> to vector<2x4xf32>
    %7 = vector.shape_cast %6 : vector<2x4xf32> to vector<2x4x1xf32>
    %cst_4 = arith.constant dense<0.000000e+00> : vector<4x1xf32>
    %8 = vector.multi_reduction <add>, %7, %cst_4 [0] : vector<2x4x1xf32> to vector<4x1xf32>
    %9 = vector.shape_cast %8 : vector<4x1xf32> to vector<1x4x1xf32>
    %cst_5 = arith.constant 0.001953125 : f32
    %10 = vector.broadcast %cst_5 : f32 to vector<1x4x1xf32>
    %11 = arith.mulf %4, %10 : vector<1x4x1xf32>
    %cst_6 = arith.constant 0.001953125 : f32
    %12 = vector.broadcast %cst_6 : f32 to vector<1x4x1xf32>
    %13 = arith.mulf %9, %12 : vector<1x4x1xf32>
    %14 = arith.mulf %11, %11 : vector<1x4x1xf32>
    %15 = arith.subf %13, %14 : vector<1x4x1xf32>
    %cst_7 = arith.constant 0.000000e+00 : f32
    %16 = vector.broadcast %cst_7 : f32 to vector<1x4x1xf32>
    %17 = arith.maximumf %15, %16 : vector<1x4x1xf32>
    %cst_8 = arith.constant 9.99999974E-6 : f32
    %18 = vector.broadcast %cst_8 : f32 to vector<1x4x1xf32>
    %19 = arith.addf %17, %18 : vector<1x4x1xf32>
    %20 = math.rsqrt %19 : vector<1x4x1xf32>
    %c0_9 = arith.constant 0 : index
    %c0_10 = arith.constant 0 : index
    %c0_11 = arith.constant 0 : index
    %21 = vector.load %arg2[%c0_9, %c0_10, %c0_11] : memref<1x4x1xf32, #tpu.memory_space<vmem>>, vector<1x4x1xf32>
    %22 = arith.mulf %21, %20 : vector<1x4x1xf32>
    %c0_12 = arith.constant 0 : index
    %c0_13 = arith.constant 0 : index
    %c0_14 = arith.constant 0 : index
    %23 = vector.load %arg3[%c0_12, %c0_13, %c0_14] : memref<1x4x1xf32, #tpu.memory_space<vmem>>, vector<1x4x1xf32>
    %24 = arith.mulf %11, %22 : vector<1x4x1xf32>
    %25 = arith.subf %23, %24 : vector<1x4x1xf32>
    %26 = vector.broadcast %22 : vector<1x4x1xf32> to vector<2x4x256xf32>
    %27 = arith.mulf %0, %26 : vector<2x4x256xf32>
    %28 = vector.broadcast %25 : vector<1x4x1xf32> to vector<2x4x256xf32>
    %29 = arith.addf %27, %28 : vector<2x4x256xf32>
    %cst_15 = arith.constant 0.000000e+00 : f32
    %30 = vector.broadcast %cst_15 : f32 to vector<2x4x256xf32>
    %31 = arith.cmpf ogt, %29, %30 : vector<2x4x256xf32>
    %cst_16 = arith.constant 1.000000e-01 : f32
    %32 = vector.broadcast %cst_16 : f32 to vector<2x4x256xf32>
    %33 = arith.mulf %32, %29 : vector<2x4x256xf32>
    %34 = arith.select %31, %29, %33 : vector<2x4x256xi1>, vector<2x4x256xf32>
    %c0_17 = arith.constant 0 : index
    %c0_18 = arith.constant 0 : index
    %c0_19 = arith.constant 0 : index
    %35 = vector.load %arg4[%c0_17, %c0_18, %c0_19] : memref<2x4x256xf32, #tpu.memory_space<vmem>>, vector<2x4x256xf32>
    tpu.vector_store %arg4[%c0_17, %c0_18, %c0_19], %34 {strides = array<i32>} : memref<2x4x256xf32, #tpu.memory_space<vmem>>, vector<2x4x256xf32>,
    return
  }
  func.func @transform_0(%arg0: i32) -> (i32, i32, i32) {
    %c0_i32 = arith.constant 0 : i32
    %c0_i32_0 = arith.constant 0 : i32
    %c0_i32_1 = arith.constant 0 : i32
    %c0_i32_2 = arith.constant 0 : i32
    return %c0_i32, %c0_i32_0, %c0_i32_1 : i32, i32, i32
  }
  func.func @transform_1(%arg0: i32) -> (i32, i32, i32) {
    %c0_i32 = arith.constant 0 : i32
    %c0_i32_0 = arith.constant 0 : i32
    %c0_i32_1 = arith.constant 0 : i32
    %c0_i32_2 = arith.constant 0 : i32
    return %c0_i32, %c0_i32_0, %c0_i32_1 : i32, i32, i32
  }
  func.func @transform_2(%arg0: i32) -> (i32, i32, i32) {
    %c0_i32 = arith.constant 0 : i32
    %c0_i32_0 = arith.constant 0 : i32
    %c0_i32_1 = arith.constant 0 : i32
    %c0_i32_2 = arith.constant 0 : i32
    return %c0_i32, %c0_i32_0, %c0_i32_1 : i32, i32, i32
  }
  func.func @transform_3(%arg0: i32) -> (i32, i32, i32) {
    %c0_i32 = arith.constant 0 : i32
    %c0_i32_0 = arith.constant 0 : i32
    %c0_i32_1 = arith.constant 0 : i32
    %c0_i32_2 = arith.constant 0 : i32
    return %c0_i32, %c0_i32_0, %c0_i32_1 : i32, i32, i32
  }
}

</mosaic_0001>

<llo_original>
// kernel: batchnorm_leakyrelu.1
$region0: #{batchnorm_leakyrelu.1}
  #allocation0 [shape = 'u32[]', space=smem, size = 0x4, offset = 0x4, fixed_abs, tag = 'smem constant byte address 0x4 - core index']
  #allocation1 [shape = 'u32[144,128]{1,0:T(1,128)}', space=vmem, size = 0x12000, scoped, tag = 'internal scratch']
  %s0 = inlined_call_operand.vmem [shape: f32[2,4,256], index: 0, kind: input, shape index: {}]
  %s1 = inlined_call_operand.vmem [shape: f32[1,4,1], index: 1, kind: input, shape index: {}]
  %s2 = inlined_call_operand.vmem [shape: f32[1,4,1], index: 2, kind: input, shape index: {}]
  %s3 = inlined_call_operand.vmem [shape: f32[2,4,256], index: 3, kind: output, shape index: {}]
  %s4 = sld [smem:[#allocation0]]
  $region22: #{batchnorm_leakyrelu.1} parent=0
    _
  %s6 = ssub.s32 1, %s4
  %s7 = scalar_select 0, %s6, %s4
  // Predicated region
  $region2: #{batchnorm_leakyrelu.1} parent=0 // pred_check
    _
  $region3: #{batchnorm_leakyrelu.1} parent=0 // pred_check_branch
    %9 = sbr.rel (0) target = $region5
  $region4: #{batchnorm_leakyrelu.1} parent=0 // pred_region
    _
  $region5: #{batchnorm_leakyrelu.1} parent=0 // pred_fallthru
    _
  // Predicated region
  $region6: #{batchnorm_leakyrelu.1} parent=0 // pred_check
    _
  $region7: #{batchnorm_leakyrelu.1} parent=0 // pred_check_branch
    %11 = sbr.rel (0) target = $region9
  $region8: #{batchnorm_leakyrelu.1} parent=0 // pred_region
    _
  $region9: #{batchnorm_leakyrelu.1} parent=0 // pred_fallthru
    _
  // Predicated region
  $region10: #{batchnorm_leakyrelu.1} parent=0 // pred_check
    _
  $region11: #{batchnorm_leakyrelu.1} parent=0 // pred_check_branch
    %13 = sbr.rel (0) target = $region13
  $region12: #{batchnorm_leakyrelu.1} parent=0 // pred_region
    _
  $region13: #{batchnorm_leakyrelu.1} parent=0 // pred_fallthru
    _
  %v14 = vld [vmem:[%s0] sm:$0xff]
  %v15 = vld [vmem:[%s0 + $0x8] sm:$0xff]
  %v18 = vcombine.high %v14, %v14
  %v19 = vcombine.high %v15, %v15
  %vm22 = vcmask 1043456
  %v23 = vsel %vm22, %v14, 0.0
  %v24 = vsel %vm22, %v18, 0.0
  %v25 = vadd.f32 %v23, %v24
  %26 = vadd.xlane.f32.xlu0 %v25
  %v27 = vpop.xlane.xlu0 %26
  %v28 = vsel %vm22, %v15, 0.0
  %v29 = vsel %vm22, %v19, 0.0
  %v30 = vadd.f32 %v28, %v29
  %31 = vadd.xlane.f32.xlu0 %v30
  %v32 = vpop.xlane.xlu0 %31
  %v33 = vsel %vm22, %v27, 0.0
  %v34 = vsel %vm22, %v32, 0.0
  %v35 = vadd.f32 %v33, %v34
  %v36 = vmul.f32 %v14, %v14
  %v37 = vmul.f32 %v15, %v15
  %v40 = vcombine.high %v36, %v36
  %v41 = vcombine.high %v37, %v37
  %v44 = vsel %vm22, %v36, 0.0
  %v45 = vsel %vm22, %v40, 0.0
  %v46 = vadd.f32 %v44, %v45
  %47 = vadd.xlane.f32.xlu0 %v46
  %v48 = vpop.xlane.xlu0 %47
  %v49 = vsel %vm22, %v37, 0.0
  %v50 = vsel %vm22, %v41, 0.0
  %v51 = vadd.f32 %v49, %v50
  %52 = vadd.xlane.f32.xlu0 %v51
  %v53 = vpop.xlane.xlu0 %52
  %v54 = vsel %vm22, %v48, 0.0
  %v55 = vsel %vm22, %v53, 0.0
  %v56 = vadd.f32 %v54, %v55
  %v57 = vmul.f32 %v35, 0.001953125
  %v58 = vmul.f32 %v56, 0.001953125
  %v59 = vmul.f32 %v57, %v57
  %v60 = vsub.f32 %v58, %v59
  %v61 = vmax.f32 %v60, 0.0
  %v62 = vadd.f32 %v61, 1e-05
  %v63 = vrsqrt.pop %v62
  %v64 = vld [vmem:[%s1] sm:$0xf]
  %v65 = vmul.f32 %v64, %v63
  %v66 = vld [vmem:[%s2] sm:$0xf]
  %v67 = vmul.f32 %v57, %v65
  %v68 = vsub.f32 %v66, %v67
  %70 = vset.pattern.permute.xlu0 0
  %71 = vperm.xlu0 %70, %v65
  %v72 = vpop.permute.xlu0 %71
  %v74 = vunpack.c.l.s4 839922192
  %v75 = vunpack.c.0.s8 %v74
  %v76 = vlaneseq
  %v77 = vshrl.u32 %v76, 7
  %v78 = vsub.s32 %v75, %v77
  %v79 = vrot.slane %v72, %v78
  %v81 = vmul.f32 %v14, %v79
  %v82 = vmul.f32 %v15, %v79
  %84 = vset.pattern.permute.xlu0 0
  %85 = vperm.xlu0 %84, %v68
  %v86 = vpop.permute.xlu0 %85
  %v88 = vunpack.c.l.s4 839922192
  %v89 = vunpack.c.0.s8 %v88
  %v90 = vlaneseq
  %v91 = vshrl.u32 %v90, 7
  %v92 = vsub.s32 %v89, %v91
  %v93 = vrot.slane %v86, %v92
  %v95 = vadd.f32 %v81, %v93
  %v96 = vadd.f32 %v82, %v93
  %vm97 = vcmp.gt.f32.partialorder %v95, 0.0
  %vm98 = vcmp.gt.f32.partialorder %v96, 0.0
  %v99 = vmul.f32 %v95, 0.1
  %v100 = vmul.f32 %v96, 0.1
  %v101 = vsel %vm97, %v95, %v99
  %v102 = vsel %vm98, %v96, %v100
  %103 = vst [vmem:[%s3] sm:$0xff] %v101
  %104 = vst [vmem:[%s3 + $0x8] sm:$0xff] %v102
  // Predicated region
  $region14: #{batchnorm_leakyrelu.1} parent=0 // pred_check
    _
  $region15: #{batchnorm_leakyrelu.1} parent=0 // pred_check_branch
    %106 = sbr.rel (0) target = $region17
  $region16: #{batchnorm_leakyrelu.1} parent=0 // pred_region
    _
  $region17: #{batchnorm_leakyrelu.1} parent=0 // pred_fallthru
    _
  // Predicated region
  $region18: #{batchnorm_leakyrelu.1} parent=0 // pred_check
    _
  $region19: #{batchnorm_leakyrelu.1} parent=0 // pred_check_branch
    %108 = sbr.rel (0) target = $region21
  $region20: #{batchnorm_leakyrelu.1} parent=0 // pred_region
    _
  $region21: #{batchnorm_leakyrelu.1} parent=0 // pred_fallthru
    _

</llo_original>
